<compile_context>
chip_gen: v6e
topology: v6e:2x2x1
jax: 0.10.0
libtpu: 0.0.40
codegen_flags: <defaults>
</compile_context>

<pallas_src>
import functools
import math

import jax
import jax.numpy as jnp
from jax.experimental import pallas as pl
from jax.experimental.pallas import tpu as pltpu

PAD = 128          # lane-dense padded feature width
NUM_LAYERS = 7     # 3 (in_proj) + 3 (hidden_proj) + 1 (out_proj)


def mlp_kernel(x_ref, w0_ref, w_ref, b_ref, out_ref):
    """Whole padded MLP forward for one batch tile, fully in VMEM.

    x_ref:   [TB, in_pad]     f32 input tile (native feature width, no HBM pad)
    w0_ref:  [in_pad, 128]    bf16 layer-0 weight (un-padded contraction dim)
    w_ref:   [6, 128, 128]    bf16 packed, zero-padded weight slab (layers 1..6)
    b_ref:   [7, 1, 128]      f32 packed, zero-padded bias slab
    out_ref: [TB, 3*128]      bf16 packed lane-dense outputs (out1|out2|out3)
    """
    def lin(h_bf16, layer):
        # bf16 x bf16 -> f32 accumulate on the MXU, bias add in f32.
        y = jnp.dot(h_bf16, w_ref[layer - 1], preferred_element_type=jnp.float32)
        return y + b_ref[layer]

    def relu(y):
        return jnp.maximum(y, 0.0)   # f32 on the VPU (v5e-safe)

    h = x_ref[...].astype(jnp.bfloat16)               # [TB, in_pad]

    # in_proj: Linear-ReLU-(Dropout)-Linear-ReLU-(Dropout)-Linear-ReLU
    # TODO(synk): Dropout(0.1) is identity here (inference semantics).
    y0 = jnp.dot(h, w0_ref[...], preferred_element_type=jnp.float32) + b_ref[0]
    h = relu(y0)
    h = relu(lin(h.astype(jnp.bfloat16), 1))
    out1 = relu(lin(h.astype(jnp.bfloat16), 2))
    out_ref[:, 0:PAD] = out1.astype(jnp.bfloat16)     # lane-dense 128-aligned

    # hidden_proj: Linear-ReLU-Linear-ReLU-Linear-ReLU
    h = relu(lin(out1.astype(jnp.bfloat16), 3))
    h = relu(lin(h.astype(jnp.bfloat16), 4))
    out2 = relu(lin(h.astype(jnp.bfloat16), 5))
    out_ref[:, PAD:2 * PAD] = out2.astype(jnp.bfloat16)

    # out_proj: Linear (no activation)
    out3 = lin(out2.astype(jnp.bfloat16), 6)
    out_ref[:, 2 * PAD:3 * PAD] = out3.astype(jnp.bfloat16)


def pack_params(params, in_pad):
    """Pack per-layer (w [in,out], b [1,out]) into padded slabs. Done ONCE."""
    w0_raw, b0 = params[0]
    fi0, fo0 = w0_raw.shape
    w0 = jnp.zeros((in_pad, PAD), jnp.bfloat16)
    w0 = w0.at[:fi0, :fo0].set(w0_raw.astype(jnp.bfloat16))

    w_slab = jnp.zeros((NUM_LAYERS - 1, PAD, PAD), jnp.bfloat16)
    b_slab = jnp.zeros((NUM_LAYERS, 1, PAD), jnp.float32)
    b_slab = b_slab.at[0, 0, :fo0].set(b0.reshape(-1).astype(jnp.float32))
    for i, (w, b) in enumerate(params[1:], start=1):
        fi, fo = w.shape
        w_slab = w_slab.at[i - 1, :fi, :fo].set(w.astype(jnp.bfloat16))
        b_slab = b_slab.at[i, 0, :fo].set(b.reshape(-1).astype(jnp.float32))
    return w0, w_slab, b_slab


@functools.partial(jax.jit, static_argnames=("hidden_size", "out_features", "tb"))
def mlp_forward(x, w0, w_slab, b_slab, *, hidden_size, out_features, tb=1024):
    """Run the fused Pallas MLP. Returns (out1, out2, out3) like module_out=True."""
    batch, in_features = x.shape
    in_pad = w0.shape[0]

    # Pad features only if the packed layer-0 K dim is larger (bf16 16-row tile).
    if in_features < in_pad:
        x = jnp.pad(x, ((0, 0), (0, in_pad - in_features)))

    # Batch tile: multiple of 8 sublanes. For small batches, clamp so the grid
    # has >= 2 steps (both v7x TensorCores participate); no-op on v5e/v6e.
    if batch <= tb:
        tb = max(8, ((-(-batch // 2)) + 7) // 8 * 8)
    batch_p = pl.cdiv(batch, tb) * tb
    if batch_p != batch:
        x = jnp.pad(x, ((0, batch_p - batch), (0, 0)))

    grid = (batch_p // tb,)
    x_spec = pl.BlockSpec((tb, in_pad), lambda i: (i, 0))
    out_spec = pl.BlockSpec((tb, 3 * PAD), lambda i: (i, 0))
    # Constant index_maps -> parameter slabs stay VMEM-resident across steps.
    w0_spec = pl.BlockSpec(w0.shape, lambda i: (0, 0))
    w_spec = pl.BlockSpec(w_slab.shape, lambda i: (0, 0, 0))
    b_spec = pl.BlockSpec(b_slab.shape, lambda i: (0, 0, 0))

    out_slab = pl.pallas_call(
        mlp_kernel,
        grid=grid,
        in_specs=[x_spec, w0_spec, w_spec, b_spec],
        out_specs=out_spec,
        out_shape=jax.ShapeDtypeStruct((batch_p, 3 * PAD), jnp.bfloat16),
        compiler_params=pltpu.CompilerParams(
            dimension_semantics=("parallel",),      # megacore / v7x 2-TC sharding
            vmem_limit_bytes=48 * 1024 * 1024,      # <= v7x 64 MiB physical VMEM
        ),
    )(x, w0, w_slab, b_slab)

    out1 = out_slab[:batch, 0:hidden_size].astype(jnp.float32)
    out2 = out_slab[:batch, PAD:PAD + hidden_size].astype(jnp.float32)
    out3 = out_slab[:batch, 2 * PAD:2 * PAD + out_features].astype(jnp.float32)
    return out1, out2, out3


def init_linear(key, fan_in, fan_out):
    """Deterministic init mimicking PyTorch nn.Linear default (uniform +/- 1/sqrt(fan_in)).
    Weight is returned pre-transposed: shape [fan_in, fan_out]."""
    kw, kb = jax.random.split(key)
    bound = 1.0 / math.sqrt(fan_in)
    w = jax.random.uniform(kw, (fan_in, fan_out), jnp.float32, -bound, bound)
    b = jax.random.uniform(kb, (1, fan_out), jnp.float32, -bound, bound)
    return w, b


def make_params(key, in_features, out_features, hidden_size=8):
    dims = [
        (in_features, hidden_size),          # in_proj L1
        (hidden_size, hidden_size),          # in_proj L2
        (hidden_size, hidden_size),          # in_proj L3
        (hidden_size, 2 * hidden_size),      # hidden_proj L1
        (2 * hidden_size, 2 * hidden_size),  # hidden_proj L2
        (2 * hidden_size, hidden_size),      # hidden_proj L3
        (hidden_size, out_features),         # out_proj
    ]
    keys = jax.random.split(key, len(dims))
    return [init_linear(k, fi, fo) for k, (fi, fo) in zip(keys, dims)]


def reference_forward(x, params):
    def lin(h, w, b):
        return h @ w + b
    relu = lambda v: jnp.maximum(v, 0.0)
    h = relu(lin(x, *params[0]))
    h = relu(lin(h, *params[1]))
    out1 = relu(lin(h, *params[2]))
    h = relu(lin(out1, *params[3]))
    h = relu(lin(h, *params[4]))
    out2 = relu(lin(h, *params[5]))
    out3 = lin(out2, *params[6])
    return out1, out2, out3


if __name__ == "__main__":
    in_features, out_features, hidden_size = 16, 4, 8
    batch = 64

    key = jax.random.PRNGKey(0)
    kx, kp = jax.random.split(key)
    x = jax.random.normal(kx, (batch, in_features), jnp.float32)
    params = make_params(kp, in_features, out_features, hidden_size)

    # Layer-0 contraction dim padded to a multiple of 16 (bf16 sublane tile).
    in_pad = max(16, ((in_features + 15) // 16) * 16)
    # Pack once (hoisted out of the per-call path), pass slabs into the jit.
    w0, w_slab, b_slab = pack_params(params, in_pad)

    # batch=64 with the default tb clamp -> tb=32, grid=(2,): exercises the
    # pipelined path and the >=2-step grid needed for v7x dual-TC sharding.
    out1, out2, out3 = mlp_forward(
        x, w0, w_slab, b_slab,
        hidden_size=hidden_size, out_features=out_features,
    )
    jax.block_until_ready((out1, out2, out3))

    r1, r2, r3 = reference_forward(x, params)
    # bf16 matmul inputs + bf16 output storage (f32 accumulate) -> loosened
    # tolerance vs the f32 reference.
    assert jnp.allclose(out1, r1, atol=5e-2, rtol=5e-2), "out1 mismatch"
    assert jnp.allclose(out2, r2, atol=5e-2, rtol=5e-2), "out2 mismatch"
    assert jnp.allclose(out3, r3, atol=5e-2, rtol=5e-2), "out3 mismatch"

    print("KERNEL_OK")
</pallas_src>

<mosaic_0001>
module attributes {stable_mosaic.version = 11 : i64} {
  func.func @mlp_kernel(%arg0: i32, %arg1: memref<32x16xf32, #tpu.memory_space<vmem>>, %arg2: memref<16x128xbf16, #tpu.memory_space<vmem>>, %arg3: memref<6x128x128xbf16, #tpu.memory_space<vmem>>, %arg4: memref<7x1x128xf32, #tpu.memory_space<vmem>>, %arg5: memref<32x384xbf16, #tpu.memory_space<vmem>>) attributes {dimension_semantics = [#tpu.dimension_semantics<parallel>], iteration_bounds = array<i64: 2>, scalar_prefetch = 0 : i64, scratch_operands = 0 : i64, tpu.core_type = #tpu.core_type<tc>, window_params = [{transform_indices = @transform_0, window_bounds = array<i64: 32, 16>}, {pipeline_mode = #tpu.pipeline_mode<synchronous>, transform_indices = @transform_1, window_bounds = array<i64: 16, 128>}, {pipeline_mode = #tpu.pipeline_mode<synchronous>, transform_indices = @transform_2, window_bounds = array<i64: 6, 128, 128>}, {pipeline_mode = #tpu.pipeline_mode<synchronous>, transform_indices = @transform_3, window_bounds = array<i64: 7, 1, 128>}, {transform_indices = @transform_4, window_bounds = array<i64: 32, 384>}]} {
    %c0 = arith.constant 0 : index
    %c0_0 = arith.constant 0 : index
    %0 = vector.load %arg1[%c0, %c0_0] : memref<32x16xf32, #tpu.memory_space<vmem>>, vector<32x16xf32>
    %1 = arith.truncf %0 : vector<32x16xf32> to vector<32x16xbf16>
    %c0_1 = arith.constant 0 : index
    %c0_2 = arith.constant 0 : index
    %2 = vector.load %arg2[%c0_1, %c0_2] : memref<16x128xbf16, #tpu.memory_space<vmem>>, vector<16x128xbf16>
    %cst = arith.constant dense<0.000000e+00> : vector<32x128xf32>
    %3 = tpu.matmul %1, %2, %cst {dimension_numbers = #tpu.dot_dimension_numbers<[1], [0], [0], [1], [0, 0, 1, 1], [], []>} : vector<32x16xbf16>, vector<16x128xbf16>, vector<32x128xf32> -> vector<32x128xf32>
    %c0_3 = arith.constant 0 : index
    %c0_4 = arith.constant 0 : index
    %c0_5 = arith.constant 0 : index
    %4 = vector.load %arg4[%c0_3, %c0_4, %c0_5] : memref<7x1x128xf32, #tpu.memory_space<vmem>>, vector<1x1x128xf32>
    %5 = vector.shape_cast %4 : vector<1x1x128xf32> to vector<1x128xf32>
    %6 = vector.broadcast %5 : vector<1x128xf32> to vector<32x128xf32>
    %7 = arith.addf %3, %6 : vector<32x128xf32>
    %cst_6 = arith.constant 0.000000e+00 : f32
    %8 = vector.broadcast %cst_6 : f32 to vector<32x128xf32>
    %9 = arith.maximumf %7, %8 : vector<32x128xf32>
    %10 = arith.truncf %9 : vector<32x128xf32> to vector<32x128xbf16>
    %c0_7 = arith.constant 0 : index
    %c0_8 = arith.constant 0 : index
    %c0_9 = arith.constant 0 : index
    %11 = vector.load %arg3[%c0_7, %c0_8, %c0_9] : memref<6x128x128xbf16, #tpu.memory_space<vmem>>, vector<1x128x128xbf16>
    %12 = vector.shape_cast %11 : vector<1x128x128xbf16> to vector<128x128xbf16>
    %cst_10 = arith.constant dense<0.000000e+00> : vector<32x128xf32>
    %13 = tpu.matmul %10, %12, %cst_10 {dimension_numbers = #tpu.dot_dimension_numbers<[1], [0], [0], [1], [0, 0, 1, 1], [], []>} : vector<32x128xbf16>, vector<128x128xbf16>, vector<32x128xf32> -> vector<32x128xf32>
    %c1 = arith.constant 1 : index
    %c0_11 = arith.constant 0 : index
    %c0_12 = arith.constant 0 : index
    %14 = vector.load %arg4[%c1, %c0_11, %c0_12] : memref<7x1x128xf32, #tpu.memory_space<vmem>>, vector<1x1x128xf32>
    %15 = vector.shape_cast %14 : vector<1x1x128xf32> to vector<1x128xf32>
    %16 = vector.broadcast %15 : vector<1x128xf32> to vector<32x128xf32>
    %17 = arith.addf %13, %16 : vector<32x128xf32>
    %cst_13 = arith.constant 0.000000e+00 : f32
    %18 = vector.broadcast %cst_13 : f32 to vector<32x128xf32>
    %19 = arith.maximumf %17, %18 : vector<32x128xf32>
    %20 = arith.truncf %19 : vector<32x128xf32> to vector<32x128xbf16>
    %c1_14 = arith.constant 1 : index
    %c0_15 = arith.constant 0 : index
    %c0_16 = arith.constant 0 : index
    %21 = vector.load %arg3[%c1_14, %c0_15, %c0_16] : memref<6x128x128xbf16, #tpu.memory_space<vmem>>, vector<1x128x128xbf16>
    %22 = vector.shape_cast %21 : vector<1x128x128xbf16> to vector<128x128xbf16>
    %cst_17 = arith.constant dense<0.000000e+00> : vector<32x128xf32>
    %23 = tpu.matmul %20, %22, %cst_17 {dimension_numbers = #tpu.dot_dimension_numbers<[1], [0], [0], [1], [0, 0, 1, 1], [], []>} : vector<32x128xbf16>, vector<128x128xbf16>, vector<32x128xf32> -> vector<32x128xf32>
    %c2 = arith.constant 2 : index
    %c0_18 = arith.constant 0 : index
    %c0_19 = arith.constant 0 : index
    %24 = vector.load %arg4[%c2, %c0_18, %c0_19] : memref<7x1x128xf32, #tpu.memory_space<vmem>>, vector<1x1x128xf32>
    %25 = vector.shape_cast %24 : vector<1x1x128xf32> to vector<1x128xf32>
    %26 = vector.broadcast %25 : vector<1x128xf32> to vector<32x128xf32>
    %27 = arith.addf %23, %26 : vector<32x128xf32>
    %cst_20 = arith.constant 0.000000e+00 : f32
    %28 = vector.broadcast %cst_20 : f32 to vector<32x128xf32>
    %29 = arith.maximumf %27, %28 : vector<32x128xf32>
    %30 = arith.truncf %29 : vector<32x128xf32> to vector<32x128xbf16>
    %c0_21 = arith.constant 0 : index
    %c0_22 = arith.constant 0 : index
    %31 = vector.load %arg5[%c0_21, %c0_22] : memref<32x384xbf16, #tpu.memory_space<vmem>>, vector<32x128xbf16>
    tpu.vector_store %arg5[%c0_21, %c0_22], %30 {strides = array<i32>} : memref<32x384xbf16, #tpu.memory_space<vmem>>, vector<32x128xbf16>,
    %32 = arith.truncf %29 : vector<32x128xf32> to vector<32x128xbf16>
    %c2_23 = arith.constant 2 : index
    %c0_24 = arith.constant 0 : index
    %c0_25 = arith.constant 0 : index
    %33 = vector.load %arg3[%c2_23, %c0_24, %c0_25] : memref<6x128x128xbf16, #tpu.memory_space<vmem>>, vector<1x128x128xbf16>
    %34 = vector.shape_cast %33 : vector<1x128x128xbf16> to vector<128x128xbf16>
    %cst_26 = arith.constant dense<0.000000e+00> : vector<32x128xf32>
    %35 = tpu.matmul %32, %34, %cst_26 {dimension_numbers = #tpu.dot_dimension_numbers<[1], [0], [0], [1], [0, 0, 1, 1], [], []>} : vector<32x128xbf16>, vector<128x128xbf16>, vector<32x128xf32> -> vector<32x128xf32>
    %c3 = arith.constant 3 : index
    %c0_27 = arith.constant 0 : index
    %c0_28 = arith.constant 0 : index
    %36 = vector.load %arg4[%c3, %c0_27, %c0_28] : memref<7x1x128xf32, #tpu.memory_space<vmem>>, vector<1x1x128xf32>
    %37 = vector.shape_cast %36 : vector<1x1x128xf32> to vector<1x128xf32>
    %38 = vector.broadcast %37 : vector<1x128xf32> to vector<32x128xf32>
    %39 = arith.addf %35, %38 : vector<32x128xf32>
    %cst_29 = arith.constant 0.000000e+00 : f32
    %40 = vector.broadcast %cst_29 : f32 to vector<32x128xf32>
    %41 = arith.maximumf %39, %40 : vector<32x128xf32>
    %42 = arith.truncf %41 : vector<32x128xf32> to vector<32x128xbf16>
    %c3_30 = arith.constant 3 : index
    %c0_31 = arith.constant 0 : index
    %c0_32 = arith.constant 0 : index
    %43 = vector.load %arg3[%c3_30, %c0_31, %c0_32] : memref<6x128x128xbf16, #tpu.memory_space<vmem>>, vector<1x128x128xbf16>
    %44 = vector.shape_cast %43 : vector<1x128x128xbf16> to vector<128x128xbf16>
    %cst_33 = arith.constant dense<0.000000e+00> : vector<32x128xf32>
    %45 = tpu.matmul %42, %44, %cst_33 {dimension_numbers = #tpu.dot_dimension_numbers<[1], [0], [0], [1], [0, 0, 1, 1], [], []>} : vector<32x128xbf16>, vector<128x128xbf16>, vector<32x128xf32> -> vector<32x128xf32>
    %c4 = arith.constant 4 : index
    %c0_34 = arith.constant 0 : index
    %c0_35 = arith.constant 0 : index
    %46 = vector.load %arg4[%c4, %c0_34, %c0_35] : memref<7x1x128xf32, #tpu.memory_space<vmem>>, vector<1x1x128xf32>
    %47 = vector.shape_cast %46 : vector<1x1x128xf32> to vector<1x128xf32>
    %48 = vector.broadcast %47 : vector<1x128xf32> to vector<32x128xf32>
    %49 = arith.addf %45, %48 : vector<32x128xf32>
    %cst_36 = arith.constant 0.000000e+00 : f32
    %50 = vector.broadcast %cst_36 : f32 to vector<32x128xf32>
    %51 = arith.maximumf %49, %50 : vector<32x128xf32>
    %52 = arith.truncf %51 : vector<32x128xf32> to vector<32x128xbf16>
    %c4_37 = arith.constant 4 : index
    %c0_38 = arith.constant 0 : index
    %c0_39 = arith.constant 0 : index
    %53 = vector.load %arg3[%c4_37, %c0_38, %c0_39] : memref<6x128x128xbf16, #tpu.memory_space<vmem>>, vector<1x128x128xbf16>
    %54 = vector.shape_cast %53 : vector<1x128x128xbf16> to vector<128x128xbf16>
    %cst_40 = arith.constant dense<0.000000e+00> : vector<32x128xf32>
    %55 = tpu.matmul %52, %54, %cst_40 {dimension_numbers = #tpu.dot_dimension_numbers<[1], [0], [0], [1], [0, 0, 1, 1], [], []>} : vector<32x128xbf16>, vector<128x128xbf16>, vector<32x128xf32> -> vector<32x128xf32>
    %c5 = arith.constant 5 : index
    %c0_41 = arith.constant 0 : index
    %c0_42 = arith.constant 0 : index
    %56 = vector.load %arg4[%c5, %c0_41, %c0_42] : memref<7x1x128xf32, #tpu.memory_space<vmem>>, vector<1x1x128xf32>
    %57 = vector.shape_cast %56 : vector<1x1x128xf32> to vector<1x128xf32>
    %58 = vector.broadcast %57 : vector<1x128xf32> to vector<32x128xf32>
    %59 = arith.addf %55, %58 : vector<32x128xf32>
    %cst_43 = arith.constant 0.000000e+00 : f32
    %60 = vector.broadcast %cst_43 : f32 to vector<32x128xf32>
    %61 = arith.maximumf %59, %60 : vector<32x128xf32>
    %62 = arith.truncf %61 : vector<32x128xf32> to vector<32x128xbf16>
    %c0_44 = arith.constant 0 : index
    %c128 = arith.constant 128 : index
    %63 = vector.load %arg5[%c0_44, %c128] : memref<32x384xbf16, #tpu.memory_space<vmem>>, vector<32x128xbf16>
    tpu.vector_store %arg5[%c0_44, %c128], %62 {strides = array<i32>} : memref<32x384xbf16, #tpu.memory_space<vmem>>, vector<32x128xbf16>,
    %64 = arith.truncf %61 : vector<32x128xf32> to vector<32x128xbf16>
    %c5_45 = arith.constant 5 : index
    %c0_46 = arith.constant 0 : index
    %c0_47 = arith.constant 0 : index
    %65 = vector.load %arg3[%c5_45, %c0_46, %c0_47] : memref<6x128x128xbf16, #tpu.memory_space<vmem>>, vector<1x128x128xbf16>
    %66 = vector.shape_cast %65 : vector<1x128x128xbf16> to vector<128x128xbf16>
    %cst_48 = arith.constant dense<0.000000e+00> : vector<32x128xf32>
    %67 = tpu.matmul %64, %66, %cst_48 {dimension_numbers = #tpu.dot_dimension_numbers<[1], [0], [0], [1], [0, 0, 1, 1], [], []>} : vector<32x128xbf16>, vector<128x128xbf16>, vector<32x128xf32> -> vector<32x128xf32>
    %c6 = arith.constant 6 : index
    %c0_49 = arith.constant 0 : index
    %c0_50 = arith.constant 0 : index
    %68 = vector.load %arg4[%c6, %c0_49, %c0_50] : memref<7x1x128xf32, #tpu.memory_space<vmem>>, vector<1x1x128xf32>
    %69 = vector.shape_cast %68 : vector<1x1x128xf32> to vector<1x128xf32>
    %70 = vector.broadcast %69 : vector<1x128xf32> to vector<32x128xf32>
    %71 = arith.addf %67, %70 : vector<32x128xf32>
    %72 = arith.truncf %71 : vector<32x128xf32> to vector<32x128xbf16>
    %c0_51 = arith.constant 0 : index
    %c256 = arith.constant 256 : index
    %73 = vector.load %arg5[%c0_51, %c256] : memref<32x384xbf16, #tpu.memory_space<vmem>>, vector<32x128xbf16>
    tpu.vector_store %arg5[%c0_51, %c256], %72 {strides = array<i32>} : memref<32x384xbf16, #tpu.memory_space<vmem>>, vector<32x128xbf16>,
    return
  }
  func.func @transform_0(%arg0: i32) -> (i32, i32) {
    %c0_i32 = arith.constant 0 : i32
    %c0_i32_0 = arith.constant 0 : i32
    return %arg0, %c0_i32 : i32, i32
  }
  func.func @transform_1(%arg0: i32) -> (i32, i32) {
    %c0_i32 = arith.constant 0 : i32
    %c0_i32_0 = arith.constant 0 : i32
    %c0_i32_1 = arith.constant 0 : i32
    return %c0_i32, %c0_i32_0 : i32, i32
  }
  func.func @transform_2(%arg0: i32) -> (i32, i32, i32) {
    %c0_i32 = arith.constant 0 : i32
    %c0_i32_0 = arith.constant 0 : i32
    %c0_i32_1 = arith.constant 0 : i32
    %c0_i32_2 = arith.constant 0 : i32
    return %c0_i32, %c0_i32_0, %c0_i32_1 : i32, i32, i32
  }
  func.func @transform_3(%arg0: i32) -> (i32, i32, i32) {
    %c0_i32 = arith.constant 0 : i32
    %c0_i32_0 = arith.constant 0 : i32
    %c0_i32_1 = arith.constant 0 : i32
    %c0_i32_2 = arith.constant 0 : i32
    return %c0_i32, %c0_i32_0, %c0_i32_1 : i32, i32, i32
  }
  func.func @transform_4(%arg0: i32) -> (i32, i32) {
    %c0_i32 = arith.constant 0 : i32
    %c0_i32_0 = arith.constant 0 : i32
    return %arg0, %c0_i32 : i32, i32
  }
}

</mosaic_0001>

<llo_original>
// kernel: mlp_forward.1
$region0: #{mlp_forward.1}
  #allocation0 [shape = 'u32[]', space=smem, size = 0x4, offset = 0x4, fixed_abs, tag = 'smem constant byte address 0x4 - core index']
  #allocation1 [shape = 'u32[144,128]{1,0:T(1,128)}', space=vmem, size = 0x12000, scoped, tag = 'internal scratch']
  %s0 = inlined_call_operand.vmem [shape: f32[64,16], index: 0, kind: input, shape index: {}]
  %s1 = inlined_call_operand.vmem [shape: bf16[16,128], index: 1, kind: input, shape index: {}]
  %s2 = inlined_call_operand.hbm [shape: bf16[6,128,128], index: 2, kind: input, shape index: {}]
  %s3 = inlined_call_operand.vmem [shape: f32[7,1,128], index: 3, kind: input, shape index: {}]
  %s4 = inlined_call_operand.vmem [shape: bf16[64,384], index: 4, kind: output, shape index: {}]
  %s5 = sld [smem:[#allocation0]]
  $region53: #{mlp_forward.1} parent=0
    _
  %s7 = ssub.s32 1, %s5
  %s8 = scalar_select 0, %s7, %s5
  $region1: #{mlp_forward.1} parent=0
    #allocation2 [shape = 'u8[196608]{0}', space=vmem, size = 0x30000, scoped, tag = 'input window, operand 2, single buffered']
    #allocation3 [shape = 's32[2]{0}', space=sflag, size = 0x8, scoped, tag = 'scoped memory for mlp_forward.1']
    %9 = vsyncpa [#allocation3], 0
    loop: start=0, step=1, limit=4
    $region2: #{mlp_forward.1} parent=1 // loop_pre_header
      _
    $region3: #{mlp_forward.1} parent=1 // loop_header
      %s11 = sphi 0, %s15
      %p12 = scmp.ge.s32.totalorder %s11, 4
      %s21 = sphi 0, %s23
      %s24 = sphi 0, %s21
      %s25 = sphi 0, %s24
      %s41 = sphi 0, %s25
      %s45 = sphi 0, %s45
      %s47 = sphi 0, %s45
      %s48 = sphi 0, %s47
      %s62 = sphi 0, %s48
      %s66 = sphi 0, %s66
      %s68 = sphi 0, %s66
      %s69 = sphi 0, %s68
      %s83 = sphi 0, %s69
      %s87 = sphi 0, %s87
      %s89 = sphi 0, %s87
      %s90 = sphi 0, %s89
      %s104 = sphi 0, %s90
      %s110 = sphi 0, %s112
      %s113 = sphi 0, %s110
      %s114 = sphi 0, %s113
      %s130 = sphi 0, %s114
    $region4: #{mlp_forward.1} parent=1 // loop_header_branch
      %14 = sbr.rel (%p12) target = $region8
    $region5: #{mlp_forward.1} parent=1 // loop_body
      %s16 = ssub.s32 %s11, 1
      %s17 = ssub.s32 %s11, 2
      %s18 = sadd.s32 %s11, 1
      %s19 = ssub.s32 %s11, %s18
      %p20 = scmp.eq.s32.totalorder %s19, 0
      %s22 = sadd.s32 %s21, 1
      %s23 = scalar_select %p20, %s21, %s22
      %p26 = pneg %p20
      %p27 = scmp.eq.s32.totalorder %s11, 1
      %p28 = por %p26, %p27
      %p29 = scmp.ne.s32.totalorder %s21, %s24
      %p30 = scmp.eq.s32.totalorder %s11, 0
      %p31 = por %p29, %p30
      %p32 = scmp.ne.s32.totalorder %s21, %s24
      %p33 = scmp.eq.s32.totalorder %s16, 1
      %p34 = por %p32, %p33
      %p35 = scmp.ne.s32.totalorder %s24, %s25
      %p36 = scmp.eq.s32.totalorder %s16, 0
      %p37 = por %p35, %p36
      %p38 = scmp.ne.s32.totalorder %s24, %s25
      %p39 = scmp.eq.s32.totalorder %s17, 1
      %p40 = por %p38, %p39
      %p42 = scmp.ne.s32.totalorder %s25, %s41
      %p43 = scmp.eq.s32.totalorder %s17, 0
      %p44 = por %p42, %p43
      %s46 = sadd.s32 %s45, 1
      %p49 = scmp.eq.s32.totalorder %s11, 1
      %p50 = scmp.ne.s32.totalorder %s45, %s47
      %p51 = scmp.eq.s32.totalorder %s11, 0
      %p52 = por %p50, %p51
      %p53 = scmp.ne.s32.totalorder %s45, %s47
      %p54 = scmp.eq.s32.totalorder %s16, 1
      %p55 = por %p53, %p54
      %p56 = scmp.ne.s32.totalorder %s47, %s48
      %p57 = scmp.eq.s32.totalorder %s16, 0
      %p58 = por %p56, %p57
      %p59 = scmp.ne.s32.totalorder %s47, %s48
      %p60 = scmp.eq.s32.totalorder %s17, 1
      %p61 = por %p59, %p60
      %p63 = scmp.ne.s32.totalorder %s48, %s62
      %p64 = scmp.eq.s32.totalorder %s17, 0
      %p65 = por %p63, %p64
      %s67 = sadd.s32 %s66, 1
      %p70 = scmp.eq.s32.totalorder %s11, 1
      %p71 = scmp.ne.s32.totalorder %s66, %s68
      %p72 = scmp.eq.s32.totalorder %s11, 0
      %p73 = por %p71, %p72
      %p74 = scmp.ne.s32.totalorder %s66, %s68
      %p75 = scmp.eq.s32.totalorder %s16, 1
      %p76 = por %p74, %p75
      %p77 = scmp.ne.s32.totalorder %s68, %s69
      %p78 = scmp.eq.s32.totalorder %s16, 0
      %p79 = por %p77, %p78
      %p80 = scmp.ne.s32.totalorder %s68, %s69
      %p81 = scmp.eq.s32.totalorder %s17, 1
      %p82 = por %p80, %p81
      %p84 = scmp.ne.s32.totalorder %s69, %s83
      %p85 = scmp.eq.s32.totalorder %s17, 0
      %p86 = por %p84, %p85
      %s88 = sadd.s32 %s87, 1
      %p91 = scmp.eq.s32.totalorder %s11, 1
      %p92 = scmp.ne.s32.totalorder %s87, %s89
      %p93 = scmp.eq.s32.totalorder %s11, 0
      %p94 = por %p92, %p93
      %p95 = scmp.ne.s32.totalorder %s87, %s89
      %p96 = scmp.eq.s32.totalorder %s16, 1
      %p97 = por %p95, %p96
      %p98 = scmp.ne.s32.totalorder %s89, %s90
      %p99 = scmp.eq.s32.totalorder %s16, 0
      %p100 = por %p98, %p99
      %p101 = scmp.ne.s32.totalorder %s89, %s90
      %p102 = scmp.eq.s32.totalorder %s17, 1
      %p103 = por %p101, %p102
      %p105 = scmp.ne.s32.totalorder %s90, %s104
      %p106 = scmp.eq.s32.totalorder %s17, 0
      %p107 = por %p105, %p106
      %s108 = ssub.s32 %s11, %s18
      %p109 = scmp.eq.s32.totalorder %s108, 0
      %s111 = sadd.s32 %s110, 1
      %s112 = scalar_select %p109, %s110, %s111
      %p115 = pneg %p109
      %p116 = scmp.eq.s32.totalorder %s11, 1
      %p117 = por %p115, %p116
      %p118 = scmp.ne.s32.totalorder %s110, %s113
      %p119 = scmp.eq.s32.totalorder %s11, 0
      %p120 = por %p118, %p119
      %p121 = scmp.ne.s32.totalorder %s110, %s113
      %p122 = scmp.eq.s32.totalorder %s16, 1
      %p123 = por %p121, %p122
      %p124 = scmp.ne.s32.totalorder %s113, %s114
      %p125 = scmp.eq.s32.totalorder %s16, 0
      %p126 = por %p124, %p125
      %p127 = scmp.ne.s32.totalorder %s113, %s114
      %p128 = scmp.eq.s32.totalorder %s17, 1
      %p129 = por %p127, %p128
      %p131 = scmp.ne.s32.totalorder %s114, %s130
      %p132 = scmp.eq.s32.totalorder %s17, 0
      %p133 = por %p131, %p132
      %p134 = scmp.le.s32.totalorder 1, %s11
      %p135 = scmp.lt.s32.totalorder %s11, 3
      %p136 = pnand %p134, %p135
      %p137 = pneg %p136
      // Predicated region
      $region9: #{mlp_forward.1} parent=5 // pred_check
        _
      $region10: #{mlp_forward.1} parent=5 // pred_check_branch
        %139 = sbr.rel (%p136) target = $region12
      $region11: #{mlp_forward.1} parent=5 // pred_region
        %s140 = ssub.s32 %s11, 1
        // Predicated region
        $region13: #{mlp_forward.1} parent=11 // pred_check
          %p141 = pneg %p58
        $region14: #{mlp_forward.1} parent=11 // pred_check_branch
          %143 = sbr.rel (%p141) target = $region16
        $region15: #{mlp_forward.1} parent=11 // pred_region
          _
        $region16: #{mlp_forward.1} parent=11 // pred_fallthru
          _
        // Predicated region
        $region17: #{mlp_forward.1} parent=11 // pred_check
          %p144 = pneg %p79
        $region18: #{mlp_forward.1} parent=11 // pred_check_branch
          %146 = sbr.rel (%p144) target = $region20
        $region19: #{mlp_forward.1} parent=11 // pred_region
          %s148 = ssub.s32 6144, 6144
          %149 = vsyncadd [#allocation3], %s148
          %s150 = sshll.u32 [#allocation2], 4
          %s151 = int_to_ptr.vmem [resolvable:$true] %s150
          %156 = dma.hbm_to_vmem [thread:$0]  %s2, 6144, %s151, [#allocation3], 64, 64, 4
        $region20: #{mlp_forward.1} parent=11 // pred_fallthru
          _
        // Predicated region
        $region21: #{mlp_forward.1} parent=11 // pred_check
          %p157 = pneg %p100
        $region22: #{mlp_forward.1} parent=11 // pred_check_branch
          %159 = sbr.rel (%p157) target = $region24
        $region23: #{mlp_forward.1} parent=11 // pred_region
          _
        $region24: #{mlp_forward.1} parent=11 // pred_fallthru
          _
      $region12: #{mlp_forward.1} parent=5 // pred_fallthru
        _
      %p160 = scmp.lt.s32.totalorder %s11, 2
      // Predicated region
      $region25: #{mlp_forward.1} parent=5 // pred_check
        %p161 = pneg %p160
      $region26: #{mlp_forward.1} parent=5 // pred_check_branch
        %163 = sbr.rel (%p161) target = $region28
      $region27: #{mlp_forward.1} parent=5 // pred_region
        // Predicated region
        $region29: #{mlp_forward.1} parent=27 // pred_check
          %p164 = pneg %p31
        $region30: #{mlp_forward.1} parent=27 // pred_check_branch
          %166 = sbr.rel (%p164) target = $region32
        $region31: #{mlp_forward.1} parent=27 // pred_region
          %s167 = smul.u32 4, %s11
          %p168 = scmp.lt.s32.totalorder %s167, 7
          %s169 = scalar_select %p168, %s167, 7
          %s170 = smul.addr %s169, 8
          %s171 = scalar_lea.vmem %s0, %s170
          %s172 = smul.u32 4, %s11
        $region32: #{mlp_forward.1} parent=27 // pred_fallthru
          _
      $region28: #{mlp_forward.1} parent=5 // pred_fallthru
        _
      %p173 = scmp.le.s32.totalorder 1, %s11
      %p174 = scmp.lt.s32.totalorder %s11, 3
      %p175 = pnand %p173, %p174
      %p176 = pneg %p175
      // Predicated region
      $region33: #{mlp_forward.1} parent=5 // pred_check
        _
      $region34: #{mlp_forward.1} parent=5 // pred_check_branch
        %178 = sbr.rel (%p175) target = $region36
      $region35: #{mlp_forward.1} parent=5 // pred_region
        %s179 = ssub.s32 %s11, 1
        // Predicated region
        $region37: #{mlp_forward.1} parent=35 // pred_check
          %p180 = pneg %p79
        $region38: #{mlp_forward.1} parent=35 // pred_check_branch
          %182 = sbr.rel (%p180) target = $region40
        $region39: #{mlp_forward.1} parent=35 // pred_region
          %183 = dma.done [#allocation3], 6144
        $region40: #{mlp_forward.1} parent=35 // pred_fallthru
          _
        %s184 = smul.u32 4, %s16
        %p185 = scmp.lt.s32.totalorder %s184, 7
        %s186 = scalar_select %p185, %s184, 7
        %s187 = smul.addr %s186, 8
        %s188 = scalar_lea.vmem %s0, %s187
        %p189 = pneg %p37
        %p190 = pneg %p34
        %p191 = pneg %p58
        %p192 = pneg %p55
        %p193 = pneg %p79
        %p194 = pneg %p76
        %p195 = pneg %p100
        %p196 = pneg %p97
        %p197 = pneg %p126
        %p198 = pneg %p123
        %s199 = smul.u32 4, %s16
        %p200 = scmp.lt.s32.totalorder %s199, 7
        %s201 = scalar_select %p200, %s199, 7
        %s202 = smul.addr %s201, 3
        %s203 = smul.addr %s202, 4
        %s204 = scalar_lea.vmem %s4, %s203
        %s205 = smul.u32 4, %s16
        %p206 = scmp.lt.s32.totalorder %s205, 7
        %s207 = scalar_select %p206, %s205, 7
        %s208 = smul.addr %s207, 8
        %s209 = scalar_lea.vmem %s0, %s208
        %s210 = smul.u32 4, %s16
        %s211 = smul.u32 4, %s16
        %p212 = scmp.lt.s32.totalorder %s211, 7
        %s213 = scalar_select %p212, %s211, 7
        %s214 = smul.addr %s213, 3
        %s215 = smul.addr %s214, 4
        %s216 = scalar_lea.vmem %s4, %s215
        %s217 = smul.u32 4, %s16
        %v219 = vld [vmem:[%s209] sm:$0xff]
        %v220 = vld [vmem:[%s209 + $0x8] sm:$0xff]
        %v221 = vld [vmem:[%s209 + $0x10] sm:$0xff]
        %v222 = vld [vmem:[%s209 + $0x18] sm:$0xff]
        %v223 = vpack.c.bf16 %v220, %v219
        %v224 = vpack.c.bf16 %v222, %v221
        %v225 = vld [vmem:[%s1] sm:$0xf]
        %v226 = vld [vmem:[%s1 + $0x4] sm:$0xf]
        %v227 = vld [vmem:[%s3] sm:$0x1]
        %v229 = vlaneseq
        %v230 = vshrl.u32 %v229, 7
        %v231 = vsub.s32 0, %v230
        %v232 = vrot.slane %v227, %v231
        %v236 = vunpack.c.l.b16 %v225
        %v237 = vunpack.c.l.b16 %v226
        %v238 = vpack.c.b16 %v237, %v236
        %vm240 = vcmask 130048
        %v242 = vsel %vm240, %v223, 0
        %v245 = vsel %vm240, %v224, 0
        %247 = vmatprep.subr.bf16.mxu0 0
        %248 = vmatpush1.bf16.msra.mxu0 0
        %249 = vmatprep.subr.bf16.mxu0 0
        %250 = vmatpush1.bf16.msra.mxu0 0
        %251 = vmatprep.subr.bf16.mxu0 0
        %252 = vmatpush1.bf16.msra.mxu0 0
        %253 = vmatprep.subr.bf16.mxu0 0
        %254 = vmatpush1.bf16.msra.mxu0 0
        %255 = vmatprep.subr.bf16.mxu0 0
        %256 = vmatpush1.bf16.msra.mxu0 0
        %257 = vmatprep.subr.bf16.mxu0 0
        %258 = vmatpush1.bf16.msra.mxu0 0
        %259 = vmatprep.subr.bf16.mxu0 0
        %260 = vmatpush1.bf16.msra.mxu0 0
        %261 = vmatprep.subr.bf16.mxu0 0
        %262 = vmatpush1.bf16.msra.mxu0 %v238
        %263 = vmatprep.subr.bf16.mxu0 0
        %264 = vmatpush2.bf16.msra.mxu0 0
        %265 = vmatprep.subr.bf16.mxu0 0
        %266 = vmatpush2.bf16.msra.mxu0 0
        %267 = vmatprep.subr.bf16.mxu0 0
        %268 = vmatpush2.bf16.msra.mxu0 0
        %269 = vmatprep.subr.bf16.mxu0 0
        %270 = vmatpush2.bf16.msra.mxu0 0
        %271 = vmatprep.subr.bf16.mxu0 0
        %272 = vmatpush2.bf16.msra.mxu0 0
        %273 = vmatprep.subr.bf16.mxu0 0
        %274 = vmatpush2.bf16.msra.mxu0 0
        %275 = vmatprep.subr.bf16.mxu0 0
        %276 = vmatpush2.bf16.msra.mxu0 0
        %277 = vmatprep.subr.bf16.mxu0 0
        %278 = vmatpush2.bf16.msra.mxu0 0
        %279 = vmatprep.mubr.bf16.mxu0 0
        %280 = vmatmul.mubr.bf16.gmra.mxu0 %v242
        %v281 = vpop.f32.mrf.mxu0
        %v282 = vadd.f32 %v232, %v281
        %v283 = vpop.f32.mrf.mxu0
        %v284 = vpop.f32.mrf.mxu0
        %v285 = vadd.f32 %v232, %v284
        %v286 = vpop.f32.mrf.mxu0
        %287 = vmatprep.mubr.bf16.mxu0 0
        %288 = vmatmul.mubr.bf16.gmra.mxu0 %v245
        %v289 = vpop.f32.mrf.mxu0
        %v290 = vadd.f32 %v232, %v289
        %v291 = vpop.f32.mrf.mxu0
        %v292 = vpop.f32.mrf.mxu0
        %v293 = vadd.f32 %v232, %v292
        %v294 = vpop.f32.mrf.mxu0
        %295 = vdwg.mxu0
        %v296 = vmax.f32 %v282, 0.0
        %v297 = vmax.f32 %v285, 0.0
        %v298 = vmax.f32 %v290, 0.0
        %v299 = vmax.f32 %v293, 0.0
        %v300 = vpack.c.bf16 %v297, %v296
        %v301 = vpack.c.bf16 %v299, %v298
        %v302 = vld [vmem:[#allocation2] sm:$0xf]
        %v303 = vld [vmem:[#allocation2 + $0x4] sm:$0xf]
        %v304 = vld [vmem:[#allocation2 + $0x8] sm:$0xf]
        %v305 = vld [vmem:[#allocation2 + $0xc] sm:$0xf]
        %v306 = vld [vmem:[#allocation2 + $0x10] sm:$0xf]
        %v307 = vld [vmem:[#allocation2 + $0x14] sm:$0xf]
        %v308 = vld [vmem:[#allocation2 + $0x18] sm:$0xf]
        %v309 = vld [vmem:[#allocation2 + $0x1c] sm:$0xf]
        %v310 = vld [vmem:[#allocation2 + $0x20] sm:$0xf]
        %v311 = vld [vmem:[#allocation2 + $0x24] sm:$0xf]
        %v312 = vld [vmem:[#allocation2 + $0x28] sm:$0xf]
        %v313 = vld [vmem:[#allocation2 + $0x2c] sm:$0xf]
        %v314 = vld [vmem:[#allocation2 + $0x30] sm:$0xf]
        %v315 = vld [vmem:[#allocation2 + $0x34] sm:$0xf]
        %v316 = vld [vmem:[#allocation2 + $0x38] sm:$0xf]
        %v317 = vld [vmem:[#allocation2 + $0x3c] sm:$0xf]
        %s318 = scalar_lea.vmem %s3, 1
        %v319 = vld [vmem:[%s318] sm:$0x1]
        %v321 = vlaneseq
        %v322 = vshrl.u32 %v321, 7
        %v323 = vsub.s32 0, %v322
        %v324 = vrot.slane %v319, %v323
        %v342 = vunpack.c.l.b16 %v302
        %v343 = vunpack.c.l.b16 %v303
        %v344 = vunpack.c.l.b16 %v304
        %v345 = vunpack.c.l.b16 %v305
        %v346 = vunpack.c.l.b16 %v306
        %v347 = vunpack.c.l.b16 %v307
        %v348 = vunpack.c.l.b16 %v308
        %v349 = vunpack.c.l.b16 %v309
        %v350 = vunpack.c.l.b16 %v310
        %v351 = vunpack.c.l.b16 %v311
        %v352 = vunpack.c.l.b16 %v312
        %v353 = vunpack.c.l.b16 %v313
        %v354 = vunpack.c.l.b16 %v314
        %v355 = vunpack.c.l.b16 %v315
        %v356 = vunpack.c.l.b16 %v316
        %v357 = vunpack.c.l.b16 %v317
        %v358 = vpack.c.b16 %v343, %v342
        %v359 = vpack.c.b16 %v345, %v344
        %v360 = vpack.c.b16 %v347, %v346
        %v361 = vpack.c.b16 %v349, %v348
        %v362 = vpack.c.b16 %v351, %v350
        %v363 = vpack.c.b16 %v353, %v352
        %v364 = vpack.c.b16 %v355, %v354
        %v365 = vpack.c.b16 %v357, %v356
        %374 = vmatprep.subr.bf16.mxu0 0
        %375 = vmatpush1.bf16.msra.mxu0 %v365
        %376 = vmatprep.subr.bf16.mxu0 0
        %377 = vmatpush1.bf16.msra.mxu0 %v364
        %378 = vmatprep.subr.bf16.mxu0 0
        %379 = vmatpush1.bf16.msra.mxu0 %v363
        %380 = vmatprep.subr.bf16.mxu0 0
        %381 = vmatpush1.bf16.msra.mxu0 %v362
        %382 = vmatprep.subr.bf16.mxu0 0
        %383 = vmatpush1.bf16.msra.mxu0 %v361
        %384 = vmatprep.subr.bf16.mxu0 0
        %385 = vmatpush1.bf16.msra.mxu0 %v360
        %386 = vmatprep.subr.bf16.mxu0 0
        %387 = vmatpush1.bf16.msra.mxu0 %v359
        %388 = vmatprep.subr.bf16.mxu0 0
        %389 = vmatpush1.bf16.msra.mxu0 %v358
        %390 = vmatprep.subr.bf16.mxu0 0
        %391 = vmatpush2.bf16.msra.mxu0 0
        %392 = vmatprep.subr.bf16.mxu0 0
        %393 = vmatpush2.bf16.msra.mxu0 0
        %394 = vmatprep.subr.bf16.mxu0 0
        %395 = vmatpush2.bf16.msra.mxu0 0
        %396 = vmatprep.subr.bf16.mxu0 0
        %397 = vmatpush2.bf16.msra.mxu0 0
        %398 = vmatprep.subr.bf16.mxu0 0
        %399 = vmatpush2.bf16.msra.mxu0 0
        %400 = vmatprep.subr.bf16.mxu0 0
        %401 = vmatpush2.bf16.msra.mxu0 0
        %402 = vmatprep.subr.bf16.mxu0 0
        %403 = vmatpush2.bf16.msra.mxu0 0
        %404 = vmatprep.subr.bf16.mxu0 0
        %405 = vmatpush2.bf16.msra.mxu0 0
        %406 = vmatprep.mubr.bf16.mxu0 0
        %407 = vmatmul.mubr.bf16.gmra.mxu0 %v300
        %v408 = vpop.f32.mrf.mxu0
        %v409 = vadd.f32 %v324, %v408
        %v410 = vpop.f32.mrf.mxu0
        %v411 = vpop.f32.mrf.mxu0
        %v412 = vadd.f32 %v324, %v411
        %v413 = vpop.f32.mrf.mxu0
        %414 = vmatprep.mubr.bf16.mxu0 0
        %415 = vmatmul.mubr.bf16.gmra.mxu0 %v301
        %v416 = vpop.f32.mrf.mxu0
        %v417 = vadd.f32 %v324, %v416
        %v418 = vpop.f32.mrf.mxu0
        %v419 = vpop.f32.mrf.mxu0
        %v420 = vadd.f32 %v324, %v419
        %v421 = vpop.f32.mrf.mxu0
        %422 = vdwg.mxu0
        %v423 = vmax.f32 %v409, 0.0
        %v424 = vmax.f32 %v412, 0.0
        %v425 = vmax.f32 %v417, 0.0
        %v426 = vmax.f32 %v420, 0.0
        %v427 = vpack.c.bf16 %v424, %v423
        %v428 = vpack.c.bf16 %v426, %v425
        %s429 = scalar_lea.vmem [#allocation2], 64
        %v430 = vld [vmem:[%s429] sm:$0xf]
        %v431 = vld [vmem:[%s429 + $0x4] sm:$0xf]
        %v432 = vld [vmem:[%s429 + $0x8] sm:$0xf]
        %v433 = vld [vmem:[%s429 + $0xc] sm:$0xf]
        %v434 = vld [vmem:[%s429 + $0x10] sm:$0xf]
        %v435 = vld [vmem:[%s429 + $0x14] sm:$0xf]
        %v436 = vld [vmem:[%s429 + $0x18] sm:$0xf]
        %v437 = vld [vmem:[%s429 + $0x1c] sm:$0xf]
        %v438 = vld [vmem:[%s429 + $0x20] sm:$0xf]
        %v439 = vld [vmem:[%s429 + $0x24] sm:$0xf]
        %v440 = vld [vmem:[%s429 + $0x28] sm:$0xf]
        %v441 = vld [vmem:[%s429 + $0x2c] sm:$0xf]
        %v442 = vld [vmem:[%s429 + $0x30] sm:$0xf]
        %v443 = vld [vmem:[%s429 + $0x34] sm:$0xf]
        %v444 = vld [vmem:[%s429 + $0x38] sm:$0xf]
        %v445 = vld [vmem:[%s429 + $0x3c] sm:$0xf]
        %s446 = scalar_lea.vmem %s3, 2
        %v447 = vld [vmem:[%s446] sm:$0x1]
        %v449 = vlaneseq
        %v450 = vshrl.u32 %v449, 7
        %v451 = vsub.s32 0, %v450
        %v452 = vrot.slane %v447, %v451
        %v470 = vunpack.c.l.b16 %v430
        %v471 = vunpack.c.l.b16 %v431
        %v472 = vunpack.c.l.b16 %v432
        %v473 = vunpack.c.l.b16 %v433
        %v474 = vunpack.c.l.b16 %v434
        %v475 = vunpack.c.l.b16 %v435
        %v476 = vunpack.c.l.b16 %v436
        %v477 = vunpack.c.l.b16 %v437
        %v478 = vunpack.c.l.b16 %v438
        %v479 = vunpack.c.l.b16 %v439
        %v480 = vunpack.c.l.b16 %v440
        %v481 = vunpack.c.l.b16 %v441
        %v482 = vunpack.c.l.b16 %v442
        %v483 = vunpack.c.l.b16 %v443
        %v484 = vunpack.c.l.b16 %v444
        %v485 = vunpack.c.l.b16 %v445
        %v486 = vpack.c.b16 %v471, %v470
        %v487 = vpack.c.b16 %v473, %v472
        %v488 = vpack.c.b16 %v475, %v474
        %v489 = vpack.c.b16 %v477, %v476
        %v490 = vpack.c.b16 %v479, %v478
        %v491 = vpack.c.b16 %v481, %v480
        %v492 = vpack.c.b16 %v483, %v482
        %v493 = vpack.c.b16 %v485, %v484
        %502 = vmatprep.subr.bf16.mxu0 0
        %503 = vmatpush1.bf16.msra.mxu0 %v493
        %504 = vmatprep.subr.bf16.mxu0 0
        %505 = vmatpush1.bf16.msra.mxu0 %v492
        %506 = vmatprep.subr.bf16.mxu0 0
        %507 = vmatpush1.bf16.msra.mxu0 %v491
        %508 = vmatprep.subr.bf16.mxu0 0
        %509 = vmatpush1.bf16.msra.mxu0 %v490
        %510 = vmatprep.subr.bf16.mxu0 0
        %511 = vmatpush1.bf16.msra.mxu0 %v489
        %512 = vmatprep.subr.bf16.mxu0 0
        %513 = vmatpush1.bf16.msra.mxu0 %v488
        %514 = vmatprep.subr.bf16.mxu0 0
        %515 = vmatpush1.bf16.msra.mxu0 %v487
        %516 = vmatprep.subr.bf16.mxu0 0
        %517 = vmatpush1.bf16.msra.mxu0 %v486
        %518 = vmatprep.subr.bf16.mxu0 0
        %519 = vmatpush2.bf16.msra.mxu0 0
        %520 = vmatprep.subr.bf16.mxu0 0
        %521 = vmatpush2.bf16.msra.mxu0 0
        %522 = vmatprep.subr.bf16.mxu0 0
        %523 = vmatpush2.bf16.msra.mxu0 0
        %524 = vmatprep.subr.bf16.mxu0 0
        %525 = vmatpush2.bf16.msra.mxu0 0
        %526 = vmatprep.subr.bf16.mxu0 0
        %527 = vmatpush2.bf16.msra.mxu0 0
        %528 = vmatprep.subr.bf16.mxu0 0
        %529 = vmatpush2.bf16.msra.mxu0 0
        %530 = vmatprep.subr.bf16.mxu0 0
        %531 = vmatpush2.bf16.msra.mxu0 0
        %532 = vmatprep.subr.bf16.mxu0 0
        %533 = vmatpush2.bf16.msra.mxu0 0
        %534 = vmatprep.mubr.bf16.mxu0 0
        %535 = vmatmul.mubr.bf16.gmra.mxu0 %v427
        %v536 = vpop.f32.mrf.mxu0
        %v537 = vadd.f32 %v452, %v536
        %v538 = vpop.f32.mrf.mxu0
        %v539 = vpop.f32.mrf.mxu0
        %v540 = vadd.f32 %v452, %v539
        %v541 = vpop.f32.mrf.mxu0
        %542 = vmatprep.mubr.bf16.mxu0 0
        %543 = vmatmul.mubr.bf16.gmra.mxu0 %v428
        %v544 = vpop.f32.mrf.mxu0
        %v545 = vadd.f32 %v452, %v544
        %v546 = vpop.f32.mrf.mxu0
        %v547 = vpop.f32.mrf.mxu0
        %v548 = vadd.f32 %v452, %v547
        %v549 = vpop.f32.mrf.mxu0
        %550 = vdwg.mxu0
        %v551 = vmax.f32 %v537, 0.0
        %v552 = vmax.f32 %v540, 0.0
        %v553 = vmax.f32 %v545, 0.0
        %v554 = vmax.f32 %v548, 0.0
        %v555 = vpack.c.bf16 %v552, %v551
        %v556 = vpack.c.bf16 %v554, %v553
        %v559 = vunpack.c.l.b16 %v555
        %v560 = vunpack.c.h.b16 %v555
        %v561 = vunpack.c.l.b16 %v556
        %v562 = vunpack.c.h.b16 %v556
        %v563 = vpack.c.b16 %v559, %v559
        %v564 = vpack.c.b16 %v560, %v560
        %v565 = vpack.c.b16 %v561, %v561
        %v566 = vpack.c.b16 %v562, %v562
        %571 = vst [vmem:[%s216] sm:$0xf] %v563
        %572 = vst [vmem:[%s216 + $0xc] sm:$0xf] %v564
        %573 = vst [vmem:[%s216 + $0x18] sm:$0xf] %v565
        %574 = vst [vmem:[%s216 + $0x24] sm:$0xf] %v566
        %s575 = scalar_lea.vmem [#allocation2], 128
        %v576 = vld [vmem:[%s575] sm:$0xf]
        %v577 = vld [vmem:[%s575 + $0x4] sm:$0xf]
        %v578 = vld [vmem:[%s575 + $0x8] sm:$0xf]
        %v579 = vld [vmem:[%s575 + $0xc] sm:$0xf]
        %v580 = vld [vmem:[%s575 + $0x10] sm:$0xf]
        %v581 = vld [vmem:[%s575 + $0x14] sm:$0xf]
        %v582 = vld [vmem:[%s575 + $0x18] sm:$0xf]
        %v583 = vld [vmem:[%s575 + $0x1c] sm:$0xf]
        %v584 = vld [vmem:[%s575 + $0x20] sm:$0xf]
        %v585 = vld [vmem:[%s575 + $0x24] sm:$0xf]
        %v586 = vld [vmem:[%s575 + $0x28] sm:$0xf]
        %v587 = vld [vmem:[%s575 + $0x2c] sm:$0xf]
        %v588 = vld [vmem:[%s575 + $0x30] sm:$0xf]
        %v589 = vld [vmem:[%s575 + $0x34] sm:$0xf]
        %v590 = vld [vmem:[%s575 + $0x38] sm:$0xf]
        %v591 = vld [vmem:[%s575 + $0x3c] sm:$0xf]
        %s592 = scalar_lea.vmem %s3, 3
        %v593 = vld [vmem:[%s592] sm:$0x1]
        %v595 = vlaneseq
        %v596 = vshrl.u32 %v595, 7
        %v597 = vsub.s32 0, %v596
        %v598 = vrot.slane %v593, %v597
        %v616 = vunpack.c.l.b16 %v576
        %v617 = vunpack.c.l.b16 %v577
        %v618 = vunpack.c.l.b16 %v578
        %v619 = vunpack.c.l.b16 %v579
        %v620 = vunpack.c.l.b16 %v580
        %v621 = vunpack.c.l.b16 %v581
        %v622 = vunpack.c.l.b16 %v582
        %v623 = vunpack.c.l.b16 %v583
        %v624 = vunpack.c.l.b16 %v584
        %v625 = vunpack.c.l.b16 %v585
        %v626 = vunpack.c.l.b16 %v586
        %v627 = vunpack.c.l.b16 %v587
        %v628 = vunpack.c.l.b16 %v588
        %v629 = vunpack.c.l.b16 %v589
        %v630 = vunpack.c.l.b16 %v590
        %v631 = vunpack.c.l.b16 %v591
        %v632 = vpack.c.b16 %v617, %v616
        %v633 = vpack.c.b16 %v619, %v618
        %v634 = vpack.c.b16 %v621, %v620
        %v635 = vpack.c.b16 %v623, %v622
        %v636 = vpack.c.b16 %v625, %v624
        %v637 = vpack.c.b16 %v627, %v626
        %v638 = vpack.c.b16 %v629, %v628
        %v639 = vpack.c.b16 %v631, %v630
        %648 = vmatprep.subr.bf16.mxu0 0
        %649 = vmatpush1.bf16.msra.mxu0 %v639
        %650 = vmatprep.subr.bf16.mxu0 0
        %651 = vmatpush1.bf16.msra.mxu0 %v638
        %652 = vmatprep.subr.bf16.mxu0 0
        %653 = vmatpush1.bf16.msra.mxu0 %v637
        %654 = vmatprep.subr.bf16.mxu0 0
        %655 = vmatpush1.bf16.msra.mxu0 %v636
        %656 = vmatprep.subr.bf16.mxu0 0
        %657 = vmatpush1.bf16.msra.mxu0 %v635
        %658 = vmatprep.subr.bf16.mxu0 0
        %659 = vmatpush1.bf16.msra.mxu0 %v634
        %660 = vmatprep.subr.bf16.mxu0 0
        %661 = vmatpush1.bf16.msra.mxu0 %v633
        %662 = vmatprep.subr.bf16.mxu0 0
        %663 = vmatpush1.bf16.msra.mxu0 %v632
        %664 = vmatprep.subr.bf16.mxu0 0
        %665 = vmatpush2.bf16.msra.mxu0 0
        %666 = vmatprep.subr.bf16.mxu0 0
        %667 = vmatpush2.bf16.msra.mxu0 0
        %668 = vmatprep.subr.bf16.mxu0 0
        %669 = vmatpush2.bf16.msra.mxu0 0
        %670 = vmatprep.subr.bf16.mxu0 0
        %671 = vmatpush2.bf16.msra.mxu0 0
        %672 = vmatprep.subr.bf16.mxu0 0
        %673 = vmatpush2.bf16.msra.mxu0 0
        %674 = vmatprep.subr.bf16.mxu0 0
        %675 = vmatpush2.bf16.msra.mxu0 0
        %676 = vmatprep.subr.bf16.mxu0 0
        %677 = vmatpush2.bf16.msra.mxu0 0
        %678 = vmatprep.subr.bf16.mxu0 0
        %679 = vmatpush2.bf16.msra.mxu0 0
        %680 = vmatprep.mubr.bf16.mxu0 0
        %681 = vmatmul.mubr.bf16.gmra.mxu0 %v555
        %v682 = vpop.f32.mrf.mxu0
        %v683 = vadd.f32 %v598, %v682
        %v684 = vpop.f32.mrf.mxu0
        %v685 = vpop.f32.mrf.mxu0
        %v686 = vadd.f32 %v598, %v685
        %v687 = vpop.f32.mrf.mxu0
        %688 = vmatprep.mubr.bf16.mxu0 0
        %689 = vmatmul.mubr.bf16.gmra.mxu0 %v556
        %v690 = vpop.f32.mrf.mxu0
        %v691 = vadd.f32 %v598, %v690
        %v692 = vpop.f32.mrf.mxu0
        %v693 = vpop.f32.mrf.mxu0
        %v694 = vadd.f32 %v598, %v693
        %v695 = vpop.f32.mrf.mxu0
        %696 = vdwg.mxu0
        %v697 = vmax.f32 %v683, 0.0
        %v698 = vmax.f32 %v686, 0.0
        %v699 = vmax.f32 %v691, 0.0
        %v700 = vmax.f32 %v694, 0.0
        %v701 = vpack.c.bf16 %v698, %v697
        %v702 = vpack.c.bf16 %v700, %v699
        %s703 = scalar_lea.vmem [#allocation2], 192
        %v704 = vld [vmem:[%s703] sm:$0xf]
        %v705 = vld [vmem:[%s703 + $0x4] sm:$0xf]
        %v706 = vld [vmem:[%s703 + $0x8] sm:$0xf]
        %v707 = vld [vmem:[%s703 + $0xc] sm:$0xf]
        %v708 = vld [vmem:[%s703 + $0x10] sm:$0xf]
        %v709 = vld [vmem:[%s703 + $0x14] sm:$0xf]
        %v710 = vld [vmem:[%s703 + $0x18] sm:$0xf]
        %v711 = vld [vmem:[%s703 + $0x1c] sm:$0xf]
        %v712 = vld [vmem:[%s703 + $0x20] sm:$0xf]
        %v713 = vld [vmem:[%s703 + $0x24] sm:$0xf]
        %v714 = vld [vmem:[%s703 + $0x28] sm:$0xf]
        %v715 = vld [vmem:[%s703 + $0x2c] sm:$0xf]
        %v716 = vld [vmem:[%s703 + $0x30] sm:$0xf]
        %v717 = vld [vmem:[%s703 + $0x34] sm:$0xf]
        %v718 = vld [vmem:[%s703 + $0x38] sm:$0xf]
        %v719 = vld [vmem:[%s703 + $0x3c] sm:$0xf]
        %s720 = scalar_lea.vmem %s3, 4
        %v721 = vld [vmem:[%s720] sm:$0x1]
        %v723 = vlaneseq
        %v724 = vshrl.u32 %v723, 7
        %v725 = vsub.s32 0, %v724
        %v726 = vrot.slane %v721, %v725
        %v744 = vunpack.c.l.b16 %v704
        %v745 = vunpack.c.l.b16 %v705
        %v746 = vunpack.c.l.b16 %v706
        %v747 = vunpack.c.l.b16 %v707
        %v748 = vunpack.c.l.b16 %v708
        %v749 = vunpack.c.l.b16 %v709
        %v750 = vunpack.c.l.b16 %v710
        %v751 = vunpack.c.l.b16 %v711
        %v752 = vunpack.c.l.b16 %v712
        %v753 = vunpack.c.l.b16 %v713
        %v754 = vunpack.c.l.b16 %v714
        %v755 = vunpack.c.l.b16 %v715
        %v756 = vunpack.c.l.b16 %v716
        %v757 = vunpack.c.l.b16 %v717
        %v758 = vunpack.c.l.b16 %v718
        %v759 = vunpack.c.l.b16 %v719
        %v760 = vpack.c.b16 %v745, %v744
        %v761 = vpack.c.b16 %v747, %v746
        %v762 = vpack.c.b16 %v749, %v748
        %v763 = vpack.c.b16 %v751, %v750
        %v764 = vpack.c.b16 %v753, %v752
        %v765 = vpack.c.b16 %v755, %v754
        %v766 = vpack.c.b16 %v757, %v756
        %v767 = vpack.c.b16 %v759, %v758
        %776 = vmatprep.subr.bf16.mxu0 0
        %777 = vmatpush1.bf16.msra.mxu0 %v767
        %778 = vmatprep.subr.bf16.mxu0 0
        %779 = vmatpush1.bf16.msra.mxu0 %v766
        %780 = vmatprep.subr.bf16.mxu0 0
        %781 = vmatpush1.bf16.msra.mxu0 %v765
        %782 = vmatprep.subr.bf16.mxu0 0
        %783 = vmatpush1.bf16.msra.mxu0 %v764
        %784 = vmatprep.subr.bf16.mxu0 0
        %785 = vmatpush1.bf16.msra.mxu0 %v763
        %786 = vmatprep.subr.bf16.mxu0 0
        %787 = vmatpush1.bf16.msra.mxu0 %v762
        %788 = vmatprep.subr.bf16.mxu0 0
        %789 = vmatpush1.bf16.msra.mxu0 %v761
        %790 = vmatprep.subr.bf16.mxu0 0
        %791 = vmatpush1.bf16.msra.mxu0 %v760
        %792 = vmatprep.subr.bf16.mxu0 0
        %793 = vmatpush2.bf16.msra.mxu0 0
        %794 = vmatprep.subr.bf16.mxu0 0
        %795 = vmatpush2.bf16.msra.mxu0 0
        %796 = vmatprep.subr.bf16.mxu0 0
        %797 = vmatpush2.bf16.msra.mxu0 0
        %798 = vmatprep.subr.bf16.mxu0 0
        %799 = vmatpush2.bf16.msra.mxu0 0
        %800 = vmatprep.subr.bf16.mxu0 0
        %801 = vmatpush2.bf16.msra.mxu0 0
        %802 = vmatprep.subr.bf16.mxu0 0
        %803 = vmatpush2.bf16.msra.mxu0 0
        %804 = vmatprep.subr.bf16.mxu0 0
        %805 = vmatpush2.bf16.msra.mxu0 0
        %806 = vmatprep.subr.bf16.mxu0 0
        %807 = vmatpush2.bf16.msra.mxu0 0
        %808 = vmatprep.mubr.bf16.mxu0 0
        %809 = vmatmul.mubr.bf16.gmra.mxu0 %v701
        %v810 = vpop.f32.mrf.mxu0
        %v811 = vadd.f32 %v726, %v810
        %v812 = vpop.f32.mrf.mxu0
        %v813 = vpop.f32.mrf.mxu0
        %v814 = vadd.f32 %v726, %v813
        %v815 = vpop.f32.mrf.mxu0
        %816 = vmatprep.mubr.bf16.mxu0 0
        %817 = vmatmul.mubr.bf16.gmra.mxu0 %v702
        %v818 = vpop.f32.mrf.mxu0
        %v819 = vadd.f32 %v726, %v818
        %v820 = vpop.f32.mrf.mxu0
        %v821 = vpop.f32.mrf.mxu0
        %v822 = vadd.f32 %v726, %v821
        %v823 = vpop.f32.mrf.mxu0
        %824 = vdwg.mxu0
        %v825 = vmax.f32 %v811, 0.0
        %v826 = vmax.f32 %v814, 0.0
        %v827 = vmax.f32 %v819, 0.0
        %v828 = vmax.f32 %v822, 0.0
        %v829 = vpack.c.bf16 %v826, %v825
        %v830 = vpack.c.bf16 %v828, %v827
        %s831 = scalar_lea.vmem [#allocation2], 256
        %v832 = vld [vmem:[%s831] sm:$0xf]
        %v833 = vld [vmem:[%s831 + $0x4] sm:$0xf]
        %v834 = vld [vmem:[%s831 + $0x8] sm:$0xf]
        %v835 = vld [vmem:[%s831 + $0xc] sm:$0xf]
        %v836 = vld [vmem:[%s831 + $0x10] sm:$0xf]
        %v837 = vld [vmem:[%s831 + $0x14] sm:$0xf]
        %v838 = vld [vmem:[%s831 + $0x18] sm:$0xf]
        %v839 = vld [vmem:[%s831 + $0x1c] sm:$0xf]
        %v840 = vld [vmem:[%s831 + $0x20] sm:$0xf]
        %v841 = vld [vmem:[%s831 + $0x24] sm:$0xf]
        %v842 = vld [vmem:[%s831 + $0x28] sm:$0xf]
        %v843 = vld [vmem:[%s831 + $0x2c] sm:$0xf]
        %v844 = vld [vmem:[%s831 + $0x30] sm:$0xf]
        %v845 = vld [vmem:[%s831 + $0x34] sm:$0xf]
        %v846 = vld [vmem:[%s831 + $0x38] sm:$0xf]
        %v847 = vld [vmem:[%s831 + $0x3c] sm:$0xf]
        %s848 = scalar_lea.vmem %s3, 5
        %v849 = vld [vmem:[%s848] sm:$0x1]
        %v851 = vlaneseq
        %v852 = vshrl.u32 %v851, 7
        %v853 = vsub.s32 0, %v852
        %v854 = vrot.slane %v849, %v853
        %v872 = vunpack.c.l.b16 %v832
        %v873 = vunpack.c.l.b16 %v833
        %v874 = vunpack.c.l.b16 %v834
        %v875 = vunpack.c.l.b16 %v835
        %v876 = vunpack.c.l.b16 %v836
        %v877 = vunpack.c.l.b16 %v837
        %v878 = vunpack.c.l.b16 %v838
        %v879 = vunpack.c.l.b16 %v839
        %v880 = vunpack.c.l.b16 %v840
        %v881 = vunpack.c.l.b16 %v841
        %v882 = vunpack.c.l.b16 %v842
        %v883 = vunpack.c.l.b16 %v843
        %v884 = vunpack.c.l.b16 %v844
        %v885 = vunpack.c.l.b16 %v845
        %v886 = vunpack.c.l.b16 %v846
        %v887 = vunpack.c.l.b16 %v847
        %v888 = vpack.c.b16 %v873, %v872
        %v889 = vpack.c.b16 %v875, %v874
        %v890 = vpack.c.b16 %v877, %v876
        %v891 = vpack.c.b16 %v879, %v878
        %v892 = vpack.c.b16 %v881, %v880
        %v893 = vpack.c.b16 %v883, %v882
        %v894 = vpack.c.b16 %v885, %v884
        %v895 = vpack.c.b16 %v887, %v886
        %904 = vmatprep.subr.bf16.mxu0 0
        %905 = vmatpush1.bf16.msra.mxu0 %v895
        %906 = vmatprep.subr.bf16.mxu0 0
        %907 = vmatpush1.bf16.msra.mxu0 %v894
        %908 = vmatprep.subr.bf16.mxu0 0
        %909 = vmatpush1.bf16.msra.mxu0 %v893
        %910 = vmatprep.subr.bf16.mxu0 0
        %911 = vmatpush1.bf16.msra.mxu0 %v892
        %912 = vmatprep.subr.bf16.mxu0 0
        %913 = vmatpush1.bf16.msra.mxu0 %v891
        %914 = vmatprep.subr.bf16.mxu0 0
        %915 = vmatpush1.bf16.msra.mxu0 %v890
        %916 = vmatprep.subr.bf16.mxu0 0
        %917 = vmatpush1.bf16.msra.mxu0 %v889
        %918 = vmatprep.subr.bf16.mxu0 0
        %919 = vmatpush1.bf16.msra.mxu0 %v888
        %920 = vmatprep.subr.bf16.mxu0 0
        %921 = vmatpush2.bf16.msra.mxu0 0
        %922 = vmatprep.subr.bf16.mxu0 0
        %923 = vmatpush2.bf16.msra.mxu0 0
        %924 = vmatprep.subr.bf16.mxu0 0
        %925 = vmatpush2.bf16.msra.mxu0 0
        %926 = vmatprep.subr.bf16.mxu0 0
        %927 = vmatpush2.bf16.msra.mxu0 0
        %928 = vmatprep.subr.bf16.mxu0 0
        %929 = vmatpush2.bf16.msra.mxu0 0
        %930 = vmatprep.subr.bf16.mxu0 0
        %931 = vmatpush2.bf16.msra.mxu0 0
        %932 = vmatprep.subr.bf16.mxu0 0
        %933 = vmatpush2.bf16.msra.mxu0 0
        %934 = vmatprep.subr.bf16.mxu0 0
        %935 = vmatpush2.bf16.msra.mxu0 0
        %936 = vmatprep.mubr.bf16.mxu0 0
        %937 = vmatmul.mubr.bf16.gmra.mxu0 %v829
        %v938 = vpop.f32.mrf.mxu0
        %v939 = vadd.f32 %v854, %v938
        %v940 = vpop.f32.mrf.mxu0
        %v941 = vpop.f32.mrf.mxu0
        %v942 = vadd.f32 %v854, %v941
        %v943 = vpop.f32.mrf.mxu0
        %944 = vmatprep.mubr.bf16.mxu0 0
        %945 = vmatmul.mubr.bf16.gmra.mxu0 %v830
        %v946 = vpop.f32.mrf.mxu0
        %v947 = vadd.f32 %v854, %v946
        %v948 = vpop.f32.mrf.mxu0
        %v949 = vpop.f32.mrf.mxu0
        %v950 = vadd.f32 %v854, %v949
        %v951 = vpop.f32.mrf.mxu0
        %952 = vdwg.mxu0
        %v953 = vmax.f32 %v939, 0.0
        %v954 = vmax.f32 %v942, 0.0
        %v955 = vmax.f32 %v947, 0.0
        %v956 = vmax.f32 %v950, 0.0
        %v957 = vpack.c.bf16 %v954, %v953
        %v958 = vpack.c.bf16 %v956, %v955
        %v961 = vunpack.c.l.b16 %v957
        %v962 = vunpack.c.h.b16 %v957
        %v963 = vunpack.c.l.b16 %v958
        %v964 = vunpack.c.h.b16 %v958
        %v965 = vpack.c.b16 %v961, %v961
        %v966 = vpack.c.b16 %v962, %v962
        %v967 = vpack.c.b16 %v963, %v963
        %v968 = vpack.c.b16 %v964, %v964
        %973 = vst [vmem:[%s216 + $0x4] sm:$0xf] %v965
        %974 = vst [vmem:[%s216 + $0x10] sm:$0xf] %v966
        %975 = vst [vmem:[%s216 + $0x1c] sm:$0xf] %v967
        %976 = vst [vmem:[%s216 + $0x28] sm:$0xf] %v968
        %s977 = scalar_lea.vmem [#allocation2], 320
        %v978 = vld [vmem:[%s977] sm:$0xf]
        %v979 = vld [vmem:[%s977 + $0x4] sm:$0xf]
        %v980 = vld [vmem:[%s977 + $0x8] sm:$0xf]
        %v981 = vld [vmem:[%s977 + $0xc] sm:$0xf]
        %v982 = vld [vmem:[%s977 + $0x10] sm:$0xf]
        %v983 = vld [vmem:[%s977 + $0x14] sm:$0xf]
        %v984 = vld [vmem:[%s977 + $0x18] sm:$0xf]
        %v985 = vld [vmem:[%s977 + $0x1c] sm:$0xf]
        %v986 = vld [vmem:[%s977 + $0x20] sm:$0xf]
        %v987 = vld [vmem:[%s977 + $0x24] sm:$0xf]
        %v988 = vld [vmem:[%s977 + $0x28] sm:$0xf]
        %v989 = vld [vmem:[%s977 + $0x2c] sm:$0xf]
        %v990 = vld [vmem:[%s977 + $0x30] sm:$0xf]
        %v991 = vld [vmem:[%s977 + $0x34] sm:$0xf]
        %v992 = vld [vmem:[%s977 + $0x38] sm:$0xf]
        %v993 = vld [vmem:[%s977 + $0x3c] sm:$0xf]
        %s994 = scalar_lea.vmem %s3, 6
        %v995 = vld [vmem:[%s994] sm:$0x1]
        %v997 = vlaneseq
        %v998 = vshrl.u32 %v997, 7
        %v999 = vsub.s32 0, %v998
        %v1000 = vrot.slane %v995, %v999
        %v1018 = vunpack.c.l.b16 %v978
        %v1019 = vunpack.c.l.b16 %v979
        %v1020 = vunpack.c.l.b16 %v980
        %v1021 = vunpack.c.l.b16 %v981
        %v1022 = vunpack.c.l.b16 %v982
        %v1023 = vunpack.c.l.b16 %v983
        %v1024 = vunpack.c.l.b16 %v984
        %v1025 = vunpack.c.l.b16 %v985
        %v1026 = vunpack.c.l.b16 %v986
        %v1027 = vunpack.c.l.b16 %v987
        %v1028 = vunpack.c.l.b16 %v988
        %v1029 = vunpack.c.l.b16 %v989
        %v1030 = vunpack.c.l.b16 %v990
        %v1031 = vunpack.c.l.b16 %v991
        %v1032 = vunpack.c.l.b16 %v992
        %v1033 = vunpack.c.l.b16 %v993
        %v1034 = vpack.c.b16 %v1019, %v1018
        %v1035 = vpack.c.b16 %v1021, %v1020
        %v1036 = vpack.c.b16 %v1023, %v1022
        %v1037 = vpack.c.b16 %v1025, %v1024
        %v1038 = vpack.c.b16 %v1027, %v1026
        %v1039 = vpack.c.b16 %v1029, %v1028
        %v1040 = vpack.c.b16 %v1031, %v1030
        %v1041 = vpack.c.b16 %v1033, %v1032
        %1050 = vmatprep.subr.bf16.mxu0 0
        %1051 = vmatpush1.bf16.msra.mxu0 %v1041
        %1052 = vmatprep.subr.bf16.mxu0 0
        %1053 = vmatpush1.bf16.msra.mxu0 %v1040
        %1054 = vmatprep.subr.bf16.mxu0 0
        %1055 = vmatpush1.bf16.msra.mxu0 %v1039
        %1056 = vmatprep.subr.bf16.mxu0 0
        %1057 = vmatpush1.bf16.msra.mxu0 %v1038
        %1058 = vmatprep.subr.bf16.mxu0 0
        %1059 = vmatpush1.bf16.msra.mxu0 %v1037
        %1060 = vmatprep.subr.bf16.mxu0 0
        %1061 = vmatpush1.bf16.msra.mxu0 %v1036
        %1062 = vmatprep.subr.bf16.mxu0 0
        %1063 = vmatpush1.bf16.msra.mxu0 %v1035
        %1064 = vmatprep.subr.bf16.mxu0 0
        %1065 = vmatpush1.bf16.msra.mxu0 %v1034
        %1066 = vmatprep.subr.bf16.mxu0 0
        %1067 = vmatpush2.bf16.msra.mxu0 0
        %1068 = vmatprep.subr.bf16.mxu0 0
        %1069 = vmatpush2.bf16.msra.mxu0 0
        %1070 = vmatprep.subr.bf16.mxu0 0
        %1071 = vmatpush2.bf16.msra.mxu0 0
        %1072 = vmatprep.subr.bf16.mxu0 0
        %1073 = vmatpush2.bf16.msra.mxu0 0
        %1074 = vmatprep.subr.bf16.mxu0 0
        %1075 = vmatpush2.bf16.msra.mxu0 0
        %1076 = vmatprep.subr.bf16.mxu0 0
        %1077 = vmatpush2.bf16.msra.mxu0 0
        %1078 = vmatprep.subr.bf16.mxu0 0
        %1079 = vmatpush2.bf16.msra.mxu0 0
        %1080 = vmatprep.subr.bf16.mxu0 0
        %1081 = vmatpush2.bf16.msra.mxu0 0
        %1082 = vmatprep.mubr.bf16.mxu0 0
        %1083 = vmatmul.mubr.bf16.gmra.mxu0 %v957
        %v1084 = vpop.f32.mrf.mxu0
        %v1085 = vadd.f32 %v1000, %v1084
        %v1086 = vpop.f32.mrf.mxu0
        %v1087 = vpop.f32.mrf.mxu0
        %v1088 = vadd.f32 %v1000, %v1087
        %v1089 = vpop.f32.mrf.mxu0
        %1090 = vmatprep.mubr.bf16.mxu0 0
        %1091 = vmatmul.mubr.bf16.gmra.mxu0 %v958
        %v1092 = vpop.f32.mrf.mxu0
        %v1093 = vadd.f32 %v1000, %v1092
        %v1094 = vpop.f32.mrf.mxu0
        %v1095 = vpop.f32.mrf.mxu0
        %v1096 = vadd.f32 %v1000, %v1095
        %v1097 = vpop.f32.mrf.mxu0
        %1098 = vdwg.mxu0
        %v1099 = vpack.c.bf16 %v1088, %v1085
        %v1100 = vpack.c.bf16 %v1096, %v1093
        %v1103 = vunpack.c.l.b16 %v1099
        %v1104 = vunpack.c.h.b16 %v1099
        %v1105 = vunpack.c.l.b16 %v1100
        %v1106 = vunpack.c.h.b16 %v1100
        %v1107 = vpack.c.b16 %v1103, %v1103
        %v1108 = vpack.c.b16 %v1104, %v1104
        %v1109 = vpack.c.b16 %v1105, %v1105
        %v1110 = vpack.c.b16 %v1106, %v1106
        %1115 = vst [vmem:[%s216 + $0x8] sm:$0xf] %v1107
        %1116 = vst [vmem:[%s216 + $0x14] sm:$0xf] %v1108
        %1117 = vst [vmem:[%s216 + $0x20] sm:$0xf] %v1109
        %1118 = vst [vmem:[%s216 + $0x2c] sm:$0xf] %v1110
        %s1119 = smul.u32 4, %s16
        %p1120 = scmp.lt.s32.totalorder %s1119, 7
        %s1121 = scalar_select %p1120, %s1119, 7
        %s1122 = smul.addr %s1121, 3
        %s1123 = smul.addr %s1122, 4
        %s1124 = scalar_lea.vmem %s4, %s1123
        // Predicated region
        $region41: #{mlp_forward.1} parent=35 // pred_check
          %p1125 = pneg %p123
        $region42: #{mlp_forward.1} parent=35 // pred_check_branch
          %1127 = sbr.rel (%p1125) target = $region44
        $region43: #{mlp_forward.1} parent=35 // pred_region
          %s1128 = smul.u32 4, %s16
        $region44: #{mlp_forward.1} parent=35 // pred_fallthru
          _
      $region36: #{mlp_forward.1} parent=5 // pred_fallthru
        _
      %p1129 = scmp.le.s32.totalorder 2, %s11
      // Predicated region
      $region45: #{mlp_forward.1} parent=5 // pred_check
        %p1130 = pneg %p1129
      $region46: #{mlp_forward.1} parent=5 // pred_check_branch
        %1132 = sbr.rel (%p1130) target = $region48
      $region47: #{mlp_forward.1} parent=5 // pred_region
        %s1133 = ssub.s32 %s11, 2
        // Predicated region
        $region49: #{mlp_forward.1} parent=47 // pred_check
          %p1134 = pneg %p129
        $region50: #{mlp_forward.1} parent=47 // pred_check_branch
          %1136 = sbr.rel (%p1134) target = $region52
        $region51: #{mlp_forward.1} parent=47 // pred_region
          %s1137 = smul.u32 4, %s17
          %p1138 = scmp.lt.s32.totalorder %s1137, 7
          %s1139 = scalar_select %p1138, %s1137, 7
          %s1140 = smul.addr %s1139, 3
          %s1141 = smul.addr %s1140, 4
          %s1142 = scalar_lea.vmem %s4, %s1141
        $region52: #{mlp_forward.1} parent=47 // pred_fallthru
          _
      $region48: #{mlp_forward.1} parent=5 // pred_fallthru
        _
    $region6: #{mlp_forward.1} parent=1 // loop_footer
      %s15 = sadd.s32 1, %s11
    $region7: #{mlp_forward.1} parent=1 // loop_footer_branch
      %10 = sbr.rel target = $region3
    $region8: #{mlp_forward.1} parent=1 // loop_exit
      _
    %1143 = vsyncpa [#allocation3], 1
    %s1144 = scalar_lea.sflag [#allocation3], 1
    %1145 = vsyncpa %s1144, 1

</llo_original>
